<compile_context>
chip_gen: v5e
topology: v5e:2x2
jax: 0.10.0
libtpu: 0.0.40
codegen_flags: <defaults>
</compile_context>

<pallas_src>
import math

import jax
import jax.numpy as jnp
from jax.experimental import pallas as pl
from jax.experimental.pallas import tpu as pltpu


def _exp_envelope_kernel(d_ref, o_ref):
    d = d_ref[...]
    # Compute in f32 (no-op for f32 inputs; avoids bf16 blowup near d -> 1).
    df = d.astype(jnp.float32)
    env = jnp.exp(-(df * df) / ((1.0 - df) * (1.0 + df)))
    out = jnp.where(df < 1.0, env, jnp.zeros_like(env))
    # TODO(synk): forward-only; if differentiated, the masked inf/NaN branch
    # needs the double-where trick or a custom VJP for gradient safety.
    o_ref[...] = out.astype(o_ref.dtype)


def exponential_envelope(d_scaled: jax.Array, *, target_block_bytes: int = 1 << 20) -> jax.Array:
    """Applies the SpookyNet exponential envelope elementwise (any shape)."""
    orig_shape = d_scaled.shape
    orig_dtype = d_scaled.dtype
    n = int(math.prod(orig_shape))
    if n == 0:
        return jnp.zeros(orig_shape, orig_dtype)

    flat = d_scaled.reshape(-1)

    # Pick a lane-dense width C (multiple of 128) that divides n -> no padding.
    c = None
    for cand in (1024, 512, 256, 128):
        if n % cand == 0:
            c = cand
            break

    pad = 0
    if c is None:
        # Uncommon path: total size not a multiple of 128 -> minimal pad.
        c = 512 if n >= 512 else 128
        pad = (-n) % c
        flat = jnp.pad(flat, (0, pad))

    npad = n + pad
    r = npad // c
    d2d = flat.reshape(r, c)

    itemsize = jnp.dtype(orig_dtype).itemsize
    # Row tile targeting ~1 MiB blocks; multiple of 8 (also covers bf16's 16).
    tm = max(8, (target_block_bytes // (c * itemsize)) // 8 * 8)
    if tm >= r:
        tm = r  # single full-extent block (always layout-legal)
    grid = (pl.cdiv(r, tm),)  # ragged last block handled by masked writes

    out = pl.pallas_call(
        _exp_envelope_kernel,
        out_shape=jax.ShapeDtypeStruct((r, c), orig_dtype),
        grid_spec=pltpu.PrefetchScalarGridSpec(
            num_scalar_prefetch=0,
            grid=grid,
            in_specs=[pl.BlockSpec((tm, c), lambda i: (i, 0))],
            out_specs=pl.BlockSpec((tm, c), lambda i: (i, 0)),
        ),
        compiler_params=pltpu.CompilerParams(
            dimension_semantics=("parallel",),
        ),
        cost_estimate=pl.CostEstimate(
            flops=6 * npad,
            transcendentals=npad,
            bytes_accessed=2 * npad * itemsize,
        ),
    )(d2d)

    out = out.reshape(-1)
    if pad:
        out = out[:n]
    return out.reshape(orig_shape)


def _reference(d):
    env = jnp.exp(-(d ** 2) / ((1.0 - d) * (1.0 + d)))
    return jnp.where(d < 1.0, env, jnp.zeros_like(d))


if __name__ == "__main__":
    key = jax.random.PRNGKey(0)

    # Typical use: scaled interatomic distances, shape [num_edges, num_basis].
    num_edges, num_feat = 256, 128
    # Uniform in [0, 1.25] so some values exceed the cutoff (d >= 1) and
    # exercise the masking branch.
    d_scaled = jax.random.uniform(
        key, (num_edges, num_feat), dtype=jnp.float32, minval=0.0, maxval=1.25
    )

    out = exponential_envelope(d_scaled)
    out = jax.block_until_ready(out)

    ref = _reference(d_scaled)
    assert out.shape == d_scaled.shape
    assert out.dtype == d_scaled.dtype
    assert jnp.allclose(out, ref, atol=1e-6, rtol=1e-6), "mismatch vs reference (2D)"

    # Also exercise the 1-D / ragged-size path (previously 1-lane layout).
    key1 = jax.random.PRNGKey(1)
    d1 = jax.random.uniform(key1, (300,), dtype=jnp.float32, minval=0.0, maxval=1.25)
    out1 = jax.block_until_ready(exponential_envelope(d1))
    assert out1.shape == d1.shape
    assert jnp.allclose(out1, _reference(d1), atol=1e-6, rtol=1e-6), "mismatch vs reference (1D)"

    print("KERNEL_OK")
</pallas_src>

<mosaic_0001>
module attributes {stable_mosaic.version = 11 : i64} {
  func.func @_exp_envelope_kernel(%arg0: i32, %arg1: memref<32x1024xf32, #tpu.memory_space<vmem>>, %arg2: memref<32x1024xf32, #tpu.memory_space<vmem>>) attributes {dimension_semantics = [#tpu.dimension_semantics<parallel>], iteration_bounds = array<i64: 1>, scalar_prefetch = 0 : i64, scratch_operands = 0 : i64, tpu.core_type = #tpu.core_type<tc>, window_params = [{transform_indices = @transform_0, window_bounds = array<i64: 32, 1024>}, {transform_indices = @transform_1, window_bounds = array<i64: 32, 1024>}]} {
    %c0 = arith.constant 0 : index
    %c0_0 = arith.constant 0 : index
    %0 = vector.load %arg1[%c0, %c0_0] : memref<32x1024xf32, #tpu.memory_space<vmem>>, vector<32x1024xf32>
    %1 = arith.mulf %0, %0 : vector<32x1024xf32>
    %cst = arith.constant 0.000000e+00 : f32
    %2 = vector.broadcast %cst : f32 to vector<32x1024xf32>
    %3 = arith.subf %2, %1 : vector<32x1024xf32>
    %cst_1 = arith.constant 1.000000e+00 : f32
    %4 = vector.broadcast %cst_1 : f32 to vector<32x1024xf32>
    %5 = arith.subf %4, %0 : vector<32x1024xf32>
    %cst_2 = arith.constant 1.000000e+00 : f32
    %6 = vector.broadcast %cst_2 : f32 to vector<32x1024xf32>
    %7 = arith.addf %6, %0 : vector<32x1024xf32>
    %8 = arith.mulf %5, %7 : vector<32x1024xf32>
    %9 = arith.divf %3, %8 : vector<32x1024xf32>
    %10 = math.exp %9 : vector<32x1024xf32>
    %cst_3 = arith.constant 1.000000e+00 : f32
    %11 = vector.broadcast %cst_3 : f32 to vector<32x1024xf32>
    %12 = arith.cmpf olt, %0, %11 : vector<32x1024xf32>
    %cst_4 = arith.constant 0.000000e+00 : f32
    %13 = vector.broadcast %cst_4 : f32 to vector<32x1024xf32>
    %14 = arith.select %12, %10, %13 : vector<32x1024xi1>, vector<32x1024xf32>
    %c0_5 = arith.constant 0 : index
    %c0_6 = arith.constant 0 : index
    %15 = vector.load %arg2[%c0_5, %c0_6] : memref<32x1024xf32, #tpu.memory_space<vmem>>, vector<32x1024xf32>
    tpu.vector_store %arg2[%c0_5, %c0_6], %14 {strides = array<i32>} : memref<32x1024xf32, #tpu.memory_space<vmem>>, vector<32x1024xf32>,
    return
  }
  func.func @transform_0(%arg0: i32) -> (i32, i32) {
    %c0_i32 = arith.constant 0 : i32
    %c0_i32_0 = arith.constant 0 : i32
    return %arg0, %c0_i32 : i32, i32
  }
  func.func @transform_1(%arg0: i32) -> (i32, i32) {
    %c0_i32 = arith.constant 0 : i32
    %c0_i32_0 = arith.constant 0 : i32
    return %arg0, %c0_i32 : i32, i32
  }
}

</mosaic_0001>

<llo_original>
// kernel: tpu_custom_call.1
$region0: #{tpu_custom_call.1}
  #allocation0 [shape = 'u32[]', space=smem, size = 0x4, offset = 0x4, fixed_abs, tag = 'smem constant byte address 0x4 - core index']
  #allocation1 [shape = 'u32[72,128]{1,0:T(1,128)}', space=vmem, size = 0x9000, scoped, tag = 'internal scratch']
  %s0 = inlined_call_operand.hbm [shape: f32[32,1024], index: 0, kind: input, shape index: {}]
  %s1 = inlined_call_operand.hbm [shape: f32[32,1024], index: 1, kind: output, shape index: {}]
  %s2 = sld [smem:[#allocation0]]
  $region18: #{tpu_custom_call.1} parent=0
    _
  %s4 = ssub.s32 1, %s2
  %s5 = scalar_select 0, %s4, %s2
  $region1: #{tpu_custom_call.1} parent=0
    #allocation2 [shape = 'u8[131072]{0}', space=vmem, size = 0x20000, scoped, tag = 'input window, operand 0, single buffered']
    #allocation3 [shape = 's32[1]{0}', space=sflag, size = 0x4, scoped, tag = 'scoped memory for tpu_custom_call.1']
    #allocation4 [shape = 's32[1]{0}', space=sflag, size = 0x4, scoped, tag = 'scoped memory for tpu_custom_call.1']
    #allocation5 [shape = 'u8[131072]{0}', space=vmem, size = 0x20000, scoped, tag = 'output window, operand 0, single buffered']
    %6 = vsyncpa [#allocation3], 0
    %7 = vsyncpa [#allocation4], 0
    // Predicated region
    $region2: #{tpu_custom_call.1} parent=1 // pred_check
      _
    $region3: #{tpu_custom_call.1} parent=1 // pred_check_branch
      %9 = sbr.rel (0) target = $region5
    $region4: #{tpu_custom_call.1} parent=1 // pred_region
      %11 = vsyncadd [#allocation3], 0
      %s12 = sshll.u32 %s0, 4
      %s13 = int_to_ptr.hbm [resolvable:$true] %s12
      %s14 = sshll.u32 [#allocation2], 4
      %s15 = int_to_ptr.vmem [resolvable:$true] %s14
      %20 = dma.hbm_to_vmem [thread:$0]  %s13, 4096, %s15, [#allocation3], 1024, 1024, 64
    $region5: #{tpu_custom_call.1} parent=1 // pred_fallthru
      _
    // Predicated region
    $region6: #{tpu_custom_call.1} parent=1 // pred_check
      _
    $region7: #{tpu_custom_call.1} parent=1 // pred_check_branch
      %22 = sbr.rel (0) target = $region9
    $region8: #{tpu_custom_call.1} parent=1 // pred_region
      %24 = dma.done [#allocation3], 4096
    $region9: #{tpu_custom_call.1} parent=1 // pred_fallthru
      _
    %v25 = vld [vmem:[#allocation2] sm:$0xff]
    %v26 = vld [vmem:[#allocation2 + $0x8] sm:$0xff]
    %v27 = vld [vmem:[#allocation2 + $0x10] sm:$0xff]
    %v28 = vld [vmem:[#allocation2 + $0x18] sm:$0xff]
    %v29 = vld [vmem:[#allocation2 + $0x20] sm:$0xff]
    %v30 = vld [vmem:[#allocation2 + $0x28] sm:$0xff]
    %v31 = vld [vmem:[#allocation2 + $0x30] sm:$0xff]
    %v32 = vld [vmem:[#allocation2 + $0x38] sm:$0xff]
    %v33 = vld [vmem:[#allocation2 + $0x40] sm:$0xff]
    %v34 = vld [vmem:[#allocation2 + $0x48] sm:$0xff]
    %v35 = vld [vmem:[#allocation2 + $0x50] sm:$0xff]
    %v36 = vld [vmem:[#allocation2 + $0x58] sm:$0xff]
    %v37 = vld [vmem:[#allocation2 + $0x60] sm:$0xff]
    %v38 = vld [vmem:[#allocation2 + $0x68] sm:$0xff]
    %v39 = vld [vmem:[#allocation2 + $0x70] sm:$0xff]
    %v40 = vld [vmem:[#allocation2 + $0x78] sm:$0xff]
    %v41 = vld [vmem:[#allocation2 + $0x80] sm:$0xff]
    %v42 = vld [vmem:[#allocation2 + $0x88] sm:$0xff]
    %v43 = vld [vmem:[#allocation2 + $0x90] sm:$0xff]
    %v44 = vld [vmem:[#allocation2 + $0x98] sm:$0xff]
    %v45 = vld [vmem:[#allocation2 + $0xa0] sm:$0xff]
    %v46 = vld [vmem:[#allocation2 + $0xa8] sm:$0xff]
    %v47 = vld [vmem:[#allocation2 + $0xb0] sm:$0xff]
    %v48 = vld [vmem:[#allocation2 + $0xb8] sm:$0xff]
    %v49 = vld [vmem:[#allocation2 + $0xc0] sm:$0xff]
    %v50 = vld [vmem:[#allocation2 + $0xc8] sm:$0xff]
    %v51 = vld [vmem:[#allocation2 + $0xd0] sm:$0xff]
    %v52 = vld [vmem:[#allocation2 + $0xd8] sm:$0xff]
    %v53 = vld [vmem:[#allocation2 + $0xe0] sm:$0xff]
    %v54 = vld [vmem:[#allocation2 + $0xe8] sm:$0xff]
    %v55 = vld [vmem:[#allocation2 + $0xf0] sm:$0xff]
    %v56 = vld [vmem:[#allocation2 + $0xf8] sm:$0xff]
    %v57 = vmul.f32 %v25, %v25
    %v58 = vmul.f32 %v26, %v26
    %v59 = vmul.f32 %v27, %v27
    %v60 = vmul.f32 %v28, %v28
    %v61 = vmul.f32 %v29, %v29
    %v62 = vmul.f32 %v30, %v30
    %v63 = vmul.f32 %v31, %v31
    %v64 = vmul.f32 %v32, %v32
    %v65 = vmul.f32 %v33, %v33
    %v66 = vmul.f32 %v34, %v34
    %v67 = vmul.f32 %v35, %v35
    %v68 = vmul.f32 %v36, %v36
    %v69 = vmul.f32 %v37, %v37
    %v70 = vmul.f32 %v38, %v38
    %v71 = vmul.f32 %v39, %v39
    %v72 = vmul.f32 %v40, %v40
    %v73 = vmul.f32 %v41, %v41
    %v74 = vmul.f32 %v42, %v42
    %v75 = vmul.f32 %v43, %v43
    %v76 = vmul.f32 %v44, %v44
    %v77 = vmul.f32 %v45, %v45
    %v78 = vmul.f32 %v46, %v46
    %v79 = vmul.f32 %v47, %v47
    %v80 = vmul.f32 %v48, %v48
    %v81 = vmul.f32 %v49, %v49
    %v82 = vmul.f32 %v50, %v50
    %v83 = vmul.f32 %v51, %v51
    %v84 = vmul.f32 %v52, %v52
    %v85 = vmul.f32 %v53, %v53
    %v86 = vmul.f32 %v54, %v54
    %v87 = vmul.f32 %v55, %v55
    %v88 = vmul.f32 %v56, %v56
    %v89 = vsub.f32 0.0, %v57
    %v90 = vsub.f32 0.0, %v58
    %v91 = vsub.f32 0.0, %v59
    %v92 = vsub.f32 0.0, %v60
    %v93 = vsub.f32 0.0, %v61
    %v94 = vsub.f32 0.0, %v62
    %v95 = vsub.f32 0.0, %v63
    %v96 = vsub.f32 0.0, %v64
    %v97 = vsub.f32 0.0, %v65
    %v98 = vsub.f32 0.0, %v66
    %v99 = vsub.f32 0.0, %v67
    %v100 = vsub.f32 0.0, %v68
    %v101 = vsub.f32 0.0, %v69
    %v102 = vsub.f32 0.0, %v70
    %v103 = vsub.f32 0.0, %v71
    %v104 = vsub.f32 0.0, %v72
    %v105 = vsub.f32 0.0, %v73
    %v106 = vsub.f32 0.0, %v74
    %v107 = vsub.f32 0.0, %v75
    %v108 = vsub.f32 0.0, %v76
    %v109 = vsub.f32 0.0, %v77
    %v110 = vsub.f32 0.0, %v78
    %v111 = vsub.f32 0.0, %v79
    %v112 = vsub.f32 0.0, %v80
    %v113 = vsub.f32 0.0, %v81
    %v114 = vsub.f32 0.0, %v82
    %v115 = vsub.f32 0.0, %v83
    %v116 = vsub.f32 0.0, %v84
    %v117 = vsub.f32 0.0, %v85
    %v118 = vsub.f32 0.0, %v86
    %v119 = vsub.f32 0.0, %v87
    %v120 = vsub.f32 0.0, %v88
    %v121 = vsub.f32 1.0, %v25
    %v122 = vsub.f32 1.0, %v26
    %v123 = vsub.f32 1.0, %v27
    %v124 = vsub.f32 1.0, %v28
    %v125 = vsub.f32 1.0, %v29
    %v126 = vsub.f32 1.0, %v30
    %v127 = vsub.f32 1.0, %v31
    %v128 = vsub.f32 1.0, %v32
    %v129 = vsub.f32 1.0, %v33
    %v130 = vsub.f32 1.0, %v34
    %v131 = vsub.f32 1.0, %v35
    %v132 = vsub.f32 1.0, %v36
    %v133 = vsub.f32 1.0, %v37
    %v134 = vsub.f32 1.0, %v38
    %v135 = vsub.f32 1.0, %v39
    %v136 = vsub.f32 1.0, %v40
    %v137 = vsub.f32 1.0, %v41
    %v138 = vsub.f32 1.0, %v42
    %v139 = vsub.f32 1.0, %v43
    %v140 = vsub.f32 1.0, %v44
    %v141 = vsub.f32 1.0, %v45
    %v142 = vsub.f32 1.0, %v46
    %v143 = vsub.f32 1.0, %v47
    %v144 = vsub.f32 1.0, %v48
    %v145 = vsub.f32 1.0, %v49
    %v146 = vsub.f32 1.0, %v50
    %v147 = vsub.f32 1.0, %v51
    %v148 = vsub.f32 1.0, %v52
    %v149 = vsub.f32 1.0, %v53
    %v150 = vsub.f32 1.0, %v54
    %v151 = vsub.f32 1.0, %v55
    %v152 = vsub.f32 1.0, %v56
    %v153 = vadd.f32 %v25, 1.0
    %v154 = vadd.f32 %v26, 1.0
    %v155 = vadd.f32 %v27, 1.0
    %v156 = vadd.f32 %v28, 1.0
    %v157 = vadd.f32 %v29, 1.0
    %v158 = vadd.f32 %v30, 1.0
    %v159 = vadd.f32 %v31, 1.0
    %v160 = vadd.f32 %v32, 1.0
    %v161 = vadd.f32 %v33, 1.0
    %v162 = vadd.f32 %v34, 1.0
    %v163 = vadd.f32 %v35, 1.0
    %v164 = vadd.f32 %v36, 1.0
    %v165 = vadd.f32 %v37, 1.0
    %v166 = vadd.f32 %v38, 1.0
    %v167 = vadd.f32 %v39, 1.0
    %v168 = vadd.f32 %v40, 1.0
    %v169 = vadd.f32 %v41, 1.0
    %v170 = vadd.f32 %v42, 1.0
    %v171 = vadd.f32 %v43, 1.0
    %v172 = vadd.f32 %v44, 1.0
    %v173 = vadd.f32 %v45, 1.0
    %v174 = vadd.f32 %v46, 1.0
    %v175 = vadd.f32 %v47, 1.0
    %v176 = vadd.f32 %v48, 1.0
    %v177 = vadd.f32 %v49, 1.0
    %v178 = vadd.f32 %v50, 1.0
    %v179 = vadd.f32 %v51, 1.0
    %v180 = vadd.f32 %v52, 1.0
    %v181 = vadd.f32 %v53, 1.0
    %v182 = vadd.f32 %v54, 1.0
    %v183 = vadd.f32 %v55, 1.0
    %v184 = vadd.f32 %v56, 1.0
    %v185 = vmul.f32 %v121, %v153
    %v186 = vmul.f32 %v122, %v154
    %v187 = vmul.f32 %v123, %v155
    %v188 = vmul.f32 %v124, %v156
    %v189 = vmul.f32 %v125, %v157
    %v190 = vmul.f32 %v126, %v158
    %v191 = vmul.f32 %v127, %v159
    %v192 = vmul.f32 %v128, %v160
    %v193 = vmul.f32 %v129, %v161
    %v194 = vmul.f32 %v130, %v162
    %v195 = vmul.f32 %v131, %v163
    %v196 = vmul.f32 %v132, %v164
    %v197 = vmul.f32 %v133, %v165
    %v198 = vmul.f32 %v134, %v166
    %v199 = vmul.f32 %v135, %v167
    %v200 = vmul.f32 %v136, %v168
    %v201 = vmul.f32 %v137, %v169
    %v202 = vmul.f32 %v138, %v170
    %v203 = vmul.f32 %v139, %v171
    %v204 = vmul.f32 %v140, %v172
    %v205 = vmul.f32 %v141, %v173
    %v206 = vmul.f32 %v142, %v174
    %v207 = vmul.f32 %v143, %v175
    %v208 = vmul.f32 %v144, %v176
    %v209 = vmul.f32 %v145, %v177
    %v210 = vmul.f32 %v146, %v178
    %v211 = vmul.f32 %v147, %v179
    %v212 = vmul.f32 %v148, %v180
    %v213 = vmul.f32 %v149, %v181
    %v214 = vmul.f32 %v150, %v182
    %v215 = vmul.f32 %v151, %v183
    %v216 = vmul.f32 %v152, %v184
    %v217 = vrcp.pop %v185
    %v218 = vmul.f32 %v185, %v217
    %v219 = vsub.f32 1.0, %v218
    %v220 = vmul.f32 %v217, %v219
    %v221 = vadd.f32 %v217, %v220
    %vm222 = vweird.f32 %v185
    %vm223 = vweird.f32 %v217
    %vm224 = vmor %vm222, %vm223
    %v225 = vsel %vm224, %v217, %v221
    %v226 = vand.u32 2147483647, %v185
    %vm227 = vcmp.eq.f32.partialorder %v226, 8.507059e+37
    %v228 = vand.u32 %v185, 2147483648
    %v229 = vor.u32 1.1754944e-38, %v228
    %v230 = vsel %vm227, %v229, %v225
    %v231 = vmul.f32 %v89, %v230
    %v232 = vrcp.pop %v186
    %v233 = vmul.f32 %v186, %v232
    %v234 = vsub.f32 1.0, %v233
    %v235 = vmul.f32 %v232, %v234
    %v236 = vadd.f32 %v232, %v235
    %vm237 = vweird.f32 %v186
    %vm238 = vweird.f32 %v232
    %vm239 = vmor %vm237, %vm238
    %v240 = vsel %vm239, %v232, %v236
    %v241 = vand.u32 2147483647, %v186
    %vm242 = vcmp.eq.f32.partialorder %v241, 8.507059e+37
    %v243 = vand.u32 %v186, 2147483648
    %v244 = vor.u32 1.1754944e-38, %v243
    %v245 = vsel %vm242, %v244, %v240
    %v246 = vmul.f32 %v90, %v245
    %v247 = vrcp.pop %v187
    %v248 = vmul.f32 %v187, %v247
    %v249 = vsub.f32 1.0, %v248
    %v250 = vmul.f32 %v247, %v249
    %v251 = vadd.f32 %v247, %v250
    %vm252 = vweird.f32 %v187
    %vm253 = vweird.f32 %v247
    %vm254 = vmor %vm252, %vm253
    %v255 = vsel %vm254, %v247, %v251
    %v256 = vand.u32 2147483647, %v187
    %vm257 = vcmp.eq.f32.partialorder %v256, 8.507059e+37
    %v258 = vand.u32 %v187, 2147483648
    %v259 = vor.u32 1.1754944e-38, %v258
    %v260 = vsel %vm257, %v259, %v255
    %v261 = vmul.f32 %v91, %v260
    %v262 = vrcp.pop %v188
    %v263 = vmul.f32 %v188, %v262
    %v264 = vsub.f32 1.0, %v263
    %v265 = vmul.f32 %v262, %v264
    %v266 = vadd.f32 %v262, %v265
    %vm267 = vweird.f32 %v188
    %vm268 = vweird.f32 %v262
    %vm269 = vmor %vm267, %vm268
    %v270 = vsel %vm269, %v262, %v266
    %v271 = vand.u32 2147483647, %v188
    %vm272 = vcmp.eq.f32.partialorder %v271, 8.507059e+37
    %v273 = vand.u32 %v188, 2147483648
    %v274 = vor.u32 1.1754944e-38, %v273
    %v275 = vsel %vm272, %v274, %v270
    %v276 = vmul.f32 %v92, %v275
    %v277 = vrcp.pop %v189
    %v278 = vmul.f32 %v189, %v277
    %v279 = vsub.f32 1.0, %v278
    %v280 = vmul.f32 %v277, %v279
    %v281 = vadd.f32 %v277, %v280
    %vm282 = vweird.f32 %v189
    %vm283 = vweird.f32 %v277
    %vm284 = vmor %vm282, %vm283
    %v285 = vsel %vm284, %v277, %v281
    %v286 = vand.u32 2147483647, %v189
    %vm287 = vcmp.eq.f32.partialorder %v286, 8.507059e+37
    %v288 = vand.u32 %v189, 2147483648
    %v289 = vor.u32 1.1754944e-38, %v288
    %v290 = vsel %vm287, %v289, %v285
    %v291 = vmul.f32 %v93, %v290
    %v292 = vrcp.pop %v190
    %v293 = vmul.f32 %v190, %v292
    %v294 = vsub.f32 1.0, %v293
    %v295 = vmul.f32 %v292, %v294
    %v296 = vadd.f32 %v292, %v295
    %vm297 = vweird.f32 %v190
    %vm298 = vweird.f32 %v292
    %vm299 = vmor %vm297, %vm298
    %v300 = vsel %vm299, %v292, %v296
    %v301 = vand.u32 2147483647, %v190
    %vm302 = vcmp.eq.f32.partialorder %v301, 8.507059e+37
    %v303 = vand.u32 %v190, 2147483648
    %v304 = vor.u32 1.1754944e-38, %v303
    %v305 = vsel %vm302, %v304, %v300
    %v306 = vmul.f32 %v94, %v305
    %v307 = vrcp.pop %v191
    %v308 = vmul.f32 %v191, %v307
    %v309 = vsub.f32 1.0, %v308
    %v310 = vmul.f32 %v307, %v309
    %v311 = vadd.f32 %v307, %v310
    %vm312 = vweird.f32 %v191
    %vm313 = vweird.f32 %v307
    %vm314 = vmor %vm312, %vm313
    %v315 = vsel %vm314, %v307, %v311
    %v316 = vand.u32 2147483647, %v191
    %vm317 = vcmp.eq.f32.partialorder %v316, 8.507059e+37
    %v318 = vand.u32 %v191, 2147483648
    %v319 = vor.u32 1.1754944e-38, %v318
    %v320 = vsel %vm317, %v319, %v315
    %v321 = vmul.f32 %v95, %v320
    %v322 = vrcp.pop %v192
    %v323 = vmul.f32 %v192, %v322
    %v324 = vsub.f32 1.0, %v323
    %v325 = vmul.f32 %v322, %v324
    %v326 = vadd.f32 %v322, %v325
    %vm327 = vweird.f32 %v192
    %vm328 = vweird.f32 %v322
    %vm329 = vmor %vm327, %vm328
    %v330 = vsel %vm329, %v322, %v326
    %v331 = vand.u32 2147483647, %v192
    %vm332 = vcmp.eq.f32.partialorder %v331, 8.507059e+37
    %v333 = vand.u32 %v192, 2147483648
    %v334 = vor.u32 1.1754944e-38, %v333
    %v335 = vsel %vm332, %v334, %v330
    %v336 = vmul.f32 %v96, %v335
    %v337 = vrcp.pop %v193
    %v338 = vmul.f32 %v193, %v337
    %v339 = vsub.f32 1.0, %v338
    %v340 = vmul.f32 %v337, %v339
    %v341 = vadd.f32 %v337, %v340
    %vm342 = vweird.f32 %v193
    %vm343 = vweird.f32 %v337
    %vm344 = vmor %vm342, %vm343
    %v345 = vsel %vm344, %v337, %v341
    %v346 = vand.u32 2147483647, %v193
    %vm347 = vcmp.eq.f32.partialorder %v346, 8.507059e+37
    %v348 = vand.u32 %v193, 2147483648
    %v349 = vor.u32 1.1754944e-38, %v348
    %v350 = vsel %vm347, %v349, %v345
    %v351 = vmul.f32 %v97, %v350
    %v352 = vrcp.pop %v194
    %v353 = vmul.f32 %v194, %v352
    %v354 = vsub.f32 1.0, %v353
    %v355 = vmul.f32 %v352, %v354
    %v356 = vadd.f32 %v352, %v355
    %vm357 = vweird.f32 %v194
    %vm358 = vweird.f32 %v352
    %vm359 = vmor %vm357, %vm358
    %v360 = vsel %vm359, %v352, %v356
    %v361 = vand.u32 2147483647, %v194
    %vm362 = vcmp.eq.f32.partialorder %v361, 8.507059e+37
    %v363 = vand.u32 %v194, 2147483648
    %v364 = vor.u32 1.1754944e-38, %v363
    %v365 = vsel %vm362, %v364, %v360
    %v366 = vmul.f32 %v98, %v365
    %v367 = vrcp.pop %v195
    %v368 = vmul.f32 %v195, %v367
    %v369 = vsub.f32 1.0, %v368
    %v370 = vmul.f32 %v367, %v369
    %v371 = vadd.f32 %v367, %v370
    %vm372 = vweird.f32 %v195
    %vm373 = vweird.f32 %v367
    %vm374 = vmor %vm372, %vm373
    %v375 = vsel %vm374, %v367, %v371
    %v376 = vand.u32 2147483647, %v195
    %vm377 = vcmp.eq.f32.partialorder %v376, 8.507059e+37
    %v378 = vand.u32 %v195, 2147483648
    %v379 = vor.u32 1.1754944e-38, %v378
    %v380 = vsel %vm377, %v379, %v375
    %v381 = vmul.f32 %v99, %v380
    %v382 = vrcp.pop %v196
    %v383 = vmul.f32 %v196, %v382
    %v384 = vsub.f32 1.0, %v383
    %v385 = vmul.f32 %v382, %v384
    %v386 = vadd.f32 %v382, %v385
    %vm387 = vweird.f32 %v196
    %vm388 = vweird.f32 %v382
    %vm389 = vmor %vm387, %vm388
    %v390 = vsel %vm389, %v382, %v386
    %v391 = vand.u32 2147483647, %v196
    %vm392 = vcmp.eq.f32.partialorder %v391, 8.507059e+37
    %v393 = vand.u32 %v196, 2147483648
    %v394 = vor.u32 1.1754944e-38, %v393
    %v395 = vsel %vm392, %v394, %v390
    %v396 = vmul.f32 %v100, %v395
    %v397 = vrcp.pop %v197
    %v398 = vmul.f32 %v197, %v397
    %v399 = vsub.f32 1.0, %v398
    %v400 = vmul.f32 %v397, %v399
    %v401 = vadd.f32 %v397, %v400
    %vm402 = vweird.f32 %v197
    %vm403 = vweird.f32 %v397
    %vm404 = vmor %vm402, %vm403
    %v405 = vsel %vm404, %v397, %v401
    %v406 = vand.u32 2147483647, %v197
    %vm407 = vcmp.eq.f32.partialorder %v406, 8.507059e+37
    %v408 = vand.u32 %v197, 2147483648
    %v409 = vor.u32 1.1754944e-38, %v408
    %v410 = vsel %vm407, %v409, %v405
    %v411 = vmul.f32 %v101, %v410
    %v412 = vrcp.pop %v198
    %v413 = vmul.f32 %v198, %v412
    %v414 = vsub.f32 1.0, %v413
    %v415 = vmul.f32 %v412, %v414
    %v416 = vadd.f32 %v412, %v415
    %vm417 = vweird.f32 %v198
    %vm418 = vweird.f32 %v412
    %vm419 = vmor %vm417, %vm418
    %v420 = vsel %vm419, %v412, %v416
    %v421 = vand.u32 2147483647, %v198
    %vm422 = vcmp.eq.f32.partialorder %v421, 8.507059e+37
    %v423 = vand.u32 %v198, 2147483648
    %v424 = vor.u32 1.1754944e-38, %v423
    %v425 = vsel %vm422, %v424, %v420
    %v426 = vmul.f32 %v102, %v425
    %v427 = vrcp.pop %v199
    %v428 = vmul.f32 %v199, %v427
    %v429 = vsub.f32 1.0, %v428
    %v430 = vmul.f32 %v427, %v429
    %v431 = vadd.f32 %v427, %v430
    %vm432 = vweird.f32 %v199
    %vm433 = vweird.f32 %v427
    %vm434 = vmor %vm432, %vm433
    %v435 = vsel %vm434, %v427, %v431
    %v436 = vand.u32 2147483647, %v199
    %vm437 = vcmp.eq.f32.partialorder %v436, 8.507059e+37
    %v438 = vand.u32 %v199, 2147483648
    %v439 = vor.u32 1.1754944e-38, %v438
    %v440 = vsel %vm437, %v439, %v435
    %v441 = vmul.f32 %v103, %v440
    %v442 = vrcp.pop %v200
    %v443 = vmul.f32 %v200, %v442
    %v444 = vsub.f32 1.0, %v443
    %v445 = vmul.f32 %v442, %v444
    %v446 = vadd.f32 %v442, %v445
    %vm447 = vweird.f32 %v200
    %vm448 = vweird.f32 %v442
    %vm449 = vmor %vm447, %vm448
    %v450 = vsel %vm449, %v442, %v446
    %v451 = vand.u32 2147483647, %v200
    %vm452 = vcmp.eq.f32.partialorder %v451, 8.507059e+37
    %v453 = vand.u32 %v200, 2147483648
    %v454 = vor.u32 1.1754944e-38, %v453
    %v455 = vsel %vm452, %v454, %v450
    %v456 = vmul.f32 %v104, %v455
    %v457 = vrcp.pop %v201
    %v458 = vmul.f32 %v201, %v457
    %v459 = vsub.f32 1.0, %v458
    %v460 = vmul.f32 %v457, %v459
    %v461 = vadd.f32 %v457, %v460
    %vm462 = vweird.f32 %v201
    %vm463 = vweird.f32 %v457
    %vm464 = vmor %vm462, %vm463
    %v465 = vsel %vm464, %v457, %v461
    %v466 = vand.u32 2147483647, %v201
    %vm467 = vcmp.eq.f32.partialorder %v466, 8.507059e+37
    %v468 = vand.u32 %v201, 2147483648
    %v469 = vor.u32 1.1754944e-38, %v468
    %v470 = vsel %vm467, %v469, %v465
    %v471 = vmul.f32 %v105, %v470
    %v472 = vrcp.pop %v202
    %v473 = vmul.f32 %v202, %v472
    %v474 = vsub.f32 1.0, %v473
    %v475 = vmul.f32 %v472, %v474
    %v476 = vadd.f32 %v472, %v475
    %vm477 = vweird.f32 %v202
    %vm478 = vweird.f32 %v472
    %vm479 = vmor %vm477, %vm478
    %v480 = vsel %vm479, %v472, %v476
    %v481 = vand.u32 2147483647, %v202
    %vm482 = vcmp.eq.f32.partialorder %v481, 8.507059e+37
    %v483 = vand.u32 %v202, 2147483648
    %v484 = vor.u32 1.1754944e-38, %v483
    %v485 = vsel %vm482, %v484, %v480
    %v486 = vmul.f32 %v106, %v485
    %v487 = vrcp.pop %v203
    %v488 = vmul.f32 %v203, %v487
    %v489 = vsub.f32 1.0, %v488
    %v490 = vmul.f32 %v487, %v489
    %v491 = vadd.f32 %v487, %v490
    %vm492 = vweird.f32 %v203
    %vm493 = vweird.f32 %v487
    %vm494 = vmor %vm492, %vm493
    %v495 = vsel %vm494, %v487, %v491
    %v496 = vand.u32 2147483647, %v203
    %vm497 = vcmp.eq.f32.partialorder %v496, 8.507059e+37
    %v498 = vand.u32 %v203, 2147483648
    %v499 = vor.u32 1.1754944e-38, %v498
    %v500 = vsel %vm497, %v499, %v495
    %v501 = vmul.f32 %v107, %v500
    %v502 = vrcp.pop %v204
    %v503 = vmul.f32 %v204, %v502
    %v504 = vsub.f32 1.0, %v503
    %v505 = vmul.f32 %v502, %v504
    %v506 = vadd.f32 %v502, %v505
    %vm507 = vweird.f32 %v204
    %vm508 = vweird.f32 %v502
    %vm509 = vmor %vm507, %vm508
    %v510 = vsel %vm509, %v502, %v506
    %v511 = vand.u32 2147483647, %v204
    %vm512 = vcmp.eq.f32.partialorder %v511, 8.507059e+37
    %v513 = vand.u32 %v204, 2147483648
    %v514 = vor.u32 1.1754944e-38, %v513
    %v515 = vsel %vm512, %v514, %v510
    %v516 = vmul.f32 %v108, %v515
    %v517 = vrcp.pop %v205
    %v518 = vmul.f32 %v205, %v517
    %v519 = vsub.f32 1.0, %v518
    %v520 = vmul.f32 %v517, %v519
    %v521 = vadd.f32 %v517, %v520
    %vm522 = vweird.f32 %v205
    %vm523 = vweird.f32 %v517
    %vm524 = vmor %vm522, %vm523
    %v525 = vsel %vm524, %v517, %v521
    %v526 = vand.u32 2147483647, %v205
    %vm527 = vcmp.eq.f32.partialorder %v526, 8.507059e+37
    %v528 = vand.u32 %v205, 2147483648
    %v529 = vor.u32 1.1754944e-38, %v528
    %v530 = vsel %vm527, %v529, %v525
    %v531 = vmul.f32 %v109, %v530
    %v532 = vrcp.pop %v206
    %v533 = vmul.f32 %v206, %v532
    %v534 = vsub.f32 1.0, %v533
    %v535 = vmul.f32 %v532, %v534
    %v536 = vadd.f32 %v532, %v535
    %vm537 = vweird.f32 %v206
    %vm538 = vweird.f32 %v532
    %vm539 = vmor %vm537, %vm538
    %v540 = vsel %vm539, %v532, %v536
    %v541 = vand.u32 2147483647, %v206
    %vm542 = vcmp.eq.f32.partialorder %v541, 8.507059e+37
    %v543 = vand.u32 %v206, 2147483648
    %v544 = vor.u32 1.1754944e-38, %v543
    %v545 = vsel %vm542, %v544, %v540
    %v546 = vmul.f32 %v110, %v545
    %v547 = vrcp.pop %v207
    %v548 = vmul.f32 %v207, %v547
    %v549 = vsub.f32 1.0, %v548
    %v550 = vmul.f32 %v547, %v549
    %v551 = vadd.f32 %v547, %v550
    %vm552 = vweird.f32 %v207
    %vm553 = vweird.f32 %v547
    %vm554 = vmor %vm552, %vm553
    %v555 = vsel %vm554, %v547, %v551
    %v556 = vand.u32 2147483647, %v207
    %vm557 = vcmp.eq.f32.partialorder %v556, 8.507059e+37
    %v558 = vand.u32 %v207, 2147483648
    %v559 = vor.u32 1.1754944e-38, %v558
    %v560 = vsel %vm557, %v559, %v555
    %v561 = vmul.f32 %v111, %v560
    %v562 = vrcp.pop %v208
    %v563 = vmul.f32 %v208, %v562
    %v564 = vsub.f32 1.0, %v563
    %v565 = vmul.f32 %v562, %v564
    %v566 = vadd.f32 %v562, %v565
    %vm567 = vweird.f32 %v208
    %vm568 = vweird.f32 %v562
    %vm569 = vmor %vm567, %vm568
    %v570 = vsel %vm569, %v562, %v566
    %v571 = vand.u32 2147483647, %v208
    %vm572 = vcmp.eq.f32.partialorder %v571, 8.507059e+37
    %v573 = vand.u32 %v208, 2147483648
    %v574 = vor.u32 1.1754944e-38, %v573
    %v575 = vsel %vm572, %v574, %v570
    %v576 = vmul.f32 %v112, %v575
    %v577 = vrcp.pop %v209
    %v578 = vmul.f32 %v209, %v577
    %v579 = vsub.f32 1.0, %v578
    %v580 = vmul.f32 %v577, %v579
    %v581 = vadd.f32 %v577, %v580
    %vm582 = vweird.f32 %v209
    %vm583 = vweird.f32 %v577
    %vm584 = vmor %vm582, %vm583
    %v585 = vsel %vm584, %v577, %v581
    %v586 = vand.u32 2147483647, %v209
    %vm587 = vcmp.eq.f32.partialorder %v586, 8.507059e+37
    %v588 = vand.u32 %v209, 2147483648
    %v589 = vor.u32 1.1754944e-38, %v588
    %v590 = vsel %vm587, %v589, %v585
    %v591 = vmul.f32 %v113, %v590
    %v592 = vrcp.pop %v210
    %v593 = vmul.f32 %v210, %v592
    %v594 = vsub.f32 1.0, %v593
    %v595 = vmul.f32 %v592, %v594
    %v596 = vadd.f32 %v592, %v595
    %vm597 = vweird.f32 %v210
    %vm598 = vweird.f32 %v592
    %vm599 = vmor %vm597, %vm598
    %v600 = vsel %vm599, %v592, %v596
    %v601 = vand.u32 2147483647, %v210
    %vm602 = vcmp.eq.f32.partialorder %v601, 8.507059e+37
    %v603 = vand.u32 %v210, 2147483648
    %v604 = vor.u32 1.1754944e-38, %v603
    %v605 = vsel %vm602, %v604, %v600
    %v606 = vmul.f32 %v114, %v605
    %v607 = vrcp.pop %v211
    %v608 = vmul.f32 %v211, %v607
    %v609 = vsub.f32 1.0, %v608
    %v610 = vmul.f32 %v607, %v609
    %v611 = vadd.f32 %v607, %v610
    %vm612 = vweird.f32 %v211
    %vm613 = vweird.f32 %v607
    %vm614 = vmor %vm612, %vm613
    %v615 = vsel %vm614, %v607, %v611
    %v616 = vand.u32 2147483647, %v211
    %vm617 = vcmp.eq.f32.partialorder %v616, 8.507059e+37
    %v618 = vand.u32 %v211, 2147483648
    %v619 = vor.u32 1.1754944e-38, %v618
    %v620 = vsel %vm617, %v619, %v615
    %v621 = vmul.f32 %v115, %v620
    %v622 = vrcp.pop %v212
    %v623 = vmul.f32 %v212, %v622
    %v624 = vsub.f32 1.0, %v623
    %v625 = vmul.f32 %v622, %v624
    %v626 = vadd.f32 %v622, %v625
    %vm627 = vweird.f32 %v212
    %vm628 = vweird.f32 %v622
    %vm629 = vmor %vm627, %vm628
    %v630 = vsel %vm629, %v622, %v626
    %v631 = vand.u32 2147483647, %v212
    %vm632 = vcmp.eq.f32.partialorder %v631, 8.507059e+37
    %v633 = vand.u32 %v212, 2147483648
    %v634 = vor.u32 1.1754944e-38, %v633
    %v635 = vsel %vm632, %v634, %v630
    %v636 = vmul.f32 %v116, %v635
    %v637 = vrcp.pop %v213
    %v638 = vmul.f32 %v213, %v637
    %v639 = vsub.f32 1.0, %v638
    %v640 = vmul.f32 %v637, %v639
    %v641 = vadd.f32 %v637, %v640
    %vm642 = vweird.f32 %v213
    %vm643 = vweird.f32 %v637
    %vm644 = vmor %vm642, %vm643
    %v645 = vsel %vm644, %v637, %v641
    %v646 = vand.u32 2147483647, %v213
    %vm647 = vcmp.eq.f32.partialorder %v646, 8.507059e+37
    %v648 = vand.u32 %v213, 2147483648
    %v649 = vor.u32 1.1754944e-38, %v648
    %v650 = vsel %vm647, %v649, %v645
    %v651 = vmul.f32 %v117, %v650
    %v652 = vrcp.pop %v214
    %v653 = vmul.f32 %v214, %v652
    %v654 = vsub.f32 1.0, %v653
    %v655 = vmul.f32 %v652, %v654
    %v656 = vadd.f32 %v652, %v655
    %vm657 = vweird.f32 %v214
    %vm658 = vweird.f32 %v652
    %vm659 = vmor %vm657, %vm658
    %v660 = vsel %vm659, %v652, %v656
    %v661 = vand.u32 2147483647, %v214
    %vm662 = vcmp.eq.f32.partialorder %v661, 8.507059e+37
    %v663 = vand.u32 %v214, 2147483648
    %v664 = vor.u32 1.1754944e-38, %v663
    %v665 = vsel %vm662, %v664, %v660
    %v666 = vmul.f32 %v118, %v665
    %v667 = vrcp.pop %v215
    %v668 = vmul.f32 %v215, %v667
    %v669 = vsub.f32 1.0, %v668
    %v670 = vmul.f32 %v667, %v669
    %v671 = vadd.f32 %v667, %v670
    %vm672 = vweird.f32 %v215
    %vm673 = vweird.f32 %v667
    %vm674 = vmor %vm672, %vm673
    %v675 = vsel %vm674, %v667, %v671
    %v676 = vand.u32 2147483647, %v215
    %vm677 = vcmp.eq.f32.partialorder %v676, 8.507059e+37
    %v678 = vand.u32 %v215, 2147483648
    %v679 = vor.u32 1.1754944e-38, %v678
    %v680 = vsel %vm677, %v679, %v675
    %v681 = vmul.f32 %v119, %v680
    %v682 = vrcp.pop %v216
    %v683 = vmul.f32 %v216, %v682
    %v684 = vsub.f32 1.0, %v683
    %v685 = vmul.f32 %v682, %v684
    %v686 = vadd.f32 %v682, %v685
    %vm687 = vweird.f32 %v216
    %vm688 = vweird.f32 %v682
    %vm689 = vmor %vm687, %vm688
    %v690 = vsel %vm689, %v682, %v686
    %v691 = vand.u32 2147483647, %v216
    %vm692 = vcmp.eq.f32.partialorder %v691, 8.507059e+37
    %v693 = vand.u32 %v216, 2147483648
    %v694 = vor.u32 1.1754944e-38, %v693
    %v695 = vsel %vm692, %v694, %v690
    %v696 = vmul.f32 %v120, %v695
    %v697 = vmul.f32 %v231, 1.442695
    %v698 = vpow.pop %v697
    %v699 = vmul.f32 %v246, 1.442695
    %v700 = vpow.pop %v699
    %v701 = vmul.f32 %v261, 1.442695
    %v702 = vpow.pop %v701
    %v703 = vmul.f32 %v276, 1.442695
    %v704 = vpow.pop %v703
    %v705 = vmul.f32 %v291, 1.442695
    %v706 = vpow.pop %v705
    %v707 = vmul.f32 %v306, 1.442695
    %v708 = vpow.pop %v707
    %v709 = vmul.f32 %v321, 1.442695
    %v710 = vpow.pop %v709
    %v711 = vmul.f32 %v336, 1.442695
    %v712 = vpow.pop %v711
    %v713 = vmul.f32 %v351, 1.442695
    %v714 = vpow.pop %v713
    %v715 = vmul.f32 %v366, 1.442695
    %v716 = vpow.pop %v715
    %v717 = vmul.f32 %v381, 1.442695
    %v718 = vpow.pop %v717
    %v719 = vmul.f32 %v396, 1.442695
    %v720 = vpow.pop %v719
    %v721 = vmul.f32 %v411, 1.442695
    %v722 = vpow.pop %v721
    %v723 = vmul.f32 %v426, 1.442695
    %v724 = vpow.pop %v723
    %v725 = vmul.f32 %v441, 1.442695
    %v726 = vpow.pop %v725
    %v727 = vmul.f32 %v456, 1.442695
    %v728 = vpow.pop %v727
    %v729 = vmul.f32 %v471, 1.442695
    %v730 = vpow.pop %v729
    %v731 = vmul.f32 %v486, 1.442695
    %v732 = vpow.pop %v731
    %v733 = vmul.f32 %v501, 1.442695
    %v734 = vpow.pop %v733
    %v735 = vmul.f32 %v516, 1.442695
    %v736 = vpow.pop %v735
    %v737 = vmul.f32 %v531, 1.442695
    %v738 = vpow.pop %v737
    %v739 = vmul.f32 %v546, 1.442695
    %v740 = vpow.pop %v739
    %v741 = vmul.f32 %v561, 1.442695
    %v742 = vpow.pop %v741
    %v743 = vmul.f32 %v576, 1.442695
    %v744 = vpow.pop %v743
    %v745 = vmul.f32 %v591, 1.442695
    %v746 = vpow.pop %v745
    %v747 = vmul.f32 %v606, 1.442695
    %v748 = vpow.pop %v747
    %v749 = vmul.f32 %v621, 1.442695
    %v750 = vpow.pop %v749
    %v751 = vmul.f32 %v636, 1.442695
    %v752 = vpow.pop %v751
    %v753 = vmul.f32 %v651, 1.442695
    %v754 = vpow.pop %v753
    %v755 = vmul.f32 %v666, 1.442695
    %v756 = vpow.pop %v755
    %v757 = vmul.f32 %v681, 1.442695
    %v758 = vpow.pop %v757
    %v759 = vmul.f32 %v696, 1.442695
    %v760 = vpow.pop %v759
    %vm761 = vcmp.lt.f32.partialorder %v25, 1.0
    %vm762 = vcmp.lt.f32.partialorder %v26, 1.0
    %vm763 = vcmp.lt.f32.partialorder %v27, 1.0
    %vm764 = vcmp.lt.f32.partialorder %v28, 1.0
    %vm765 = vcmp.lt.f32.partialorder %v29, 1.0
    %vm766 = vcmp.lt.f32.partialorder %v30, 1.0
    %vm767 = vcmp.lt.f32.partialorder %v31, 1.0
    %vm768 = vcmp.lt.f32.partialorder %v32, 1.0
    %vm769 = vcmp.lt.f32.partialorder %v33, 1.0
    %vm770 = vcmp.lt.f32.partialorder %v34, 1.0
    %vm771 = vcmp.lt.f32.partialorder %v35, 1.0
    %vm772 = vcmp.lt.f32.partialorder %v36, 1.0
    %vm773 = vcmp.lt.f32.partialorder %v37, 1.0
    %vm774 = vcmp.lt.f32.partialorder %v38, 1.0
    %vm775 = vcmp.lt.f32.partialorder %v39, 1.0
    %vm776 = vcmp.lt.f32.partialorder %v40, 1.0
    %vm777 = vcmp.lt.f32.partialorder %v41, 1.0
    %vm778 = vcmp.lt.f32.partialorder %v42, 1.0
    %vm779 = vcmp.lt.f32.partialorder %v43, 1.0
    %vm780 = vcmp.lt.f32.partialorder %v44, 1.0
    %vm781 = vcmp.lt.f32.partialorder %v45, 1.0
    %vm782 = vcmp.lt.f32.partialorder %v46, 1.0
    %vm783 = vcmp.lt.f32.partialorder %v47, 1.0
    %vm784 = vcmp.lt.f32.partialorder %v48, 1.0
    %vm785 = vcmp.lt.f32.partialorder %v49, 1.0
    %vm786 = vcmp.lt.f32.partialorder %v50, 1.0
    %vm787 = vcmp.lt.f32.partialorder %v51, 1.0
    %vm788 = vcmp.lt.f32.partialorder %v52, 1.0
    %vm789 = vcmp.lt.f32.partialorder %v53, 1.0
    %vm790 = vcmp.lt.f32.partialorder %v54, 1.0
    %vm791 = vcmp.lt.f32.partialorder %v55, 1.0
    %vm792 = vcmp.lt.f32.partialorder %v56, 1.0
    %v793 = vsel %vm761, %v698, 0.0
    %v794 = vsel %vm762, %v700, 0.0
    %v795 = vsel %vm763, %v702, 0.0
    %v796 = vsel %vm764, %v704, 0.0
    %v797 = vsel %vm765, %v706, 0.0
    %v798 = vsel %vm766, %v708, 0.0
    %v799 = vsel %vm767, %v710, 0.0
    %v800 = vsel %vm768, %v712, 0.0
    %v801 = vsel %vm769, %v714, 0.0
    %v802 = vsel %vm770, %v716, 0.0
    %v803 = vsel %vm771, %v718, 0.0
    %v804 = vsel %vm772, %v720, 0.0
    %v805 = vsel %vm773, %v722, 0.0
    %v806 = vsel %vm774, %v724, 0.0
    %v807 = vsel %vm775, %v726, 0.0
    %v808 = vsel %vm776, %v728, 0.0
    %v809 = vsel %vm777, %v730, 0.0
    %v810 = vsel %vm778, %v732, 0.0
    %v811 = vsel %vm779, %v734, 0.0
    %v812 = vsel %vm780, %v736, 0.0
    %v813 = vsel %vm781, %v738, 0.0
    %v814 = vsel %vm782, %v740, 0.0
    %v815 = vsel %vm783, %v742, 0.0
    %v816 = vsel %vm784, %v744, 0.0
    %v817 = vsel %vm785, %v746, 0.0
    %v818 = vsel %vm786, %v748, 0.0
    %v819 = vsel %vm787, %v750, 0.0
    %v820 = vsel %vm788, %v752, 0.0
    %v821 = vsel %vm789, %v754, 0.0
    %v822 = vsel %vm790, %v756, 0.0
    %v823 = vsel %vm791, %v758, 0.0
    %v824 = vsel %vm792, %v760, 0.0
    %825 = vst [vmem:[#allocation5] sm:$0xff] %v793
    %826 = vst [vmem:[#allocation5 + $0x8] sm:$0xff] %v794
    %827 = vst [vmem:[#allocation5 + $0x10] sm:$0xff] %v795
    %828 = vst [vmem:[#allocation5 + $0x18] sm:$0xff] %v796
    %829 = vst [vmem:[#allocation5 + $0x20] sm:$0xff] %v797
    %830 = vst [vmem:[#allocation5 + $0x28] sm:$0xff] %v798
    %831 = vst [vmem:[#allocation5 + $0x30] sm:$0xff] %v799
    %832 = vst [vmem:[#allocation5 + $0x38] sm:$0xff] %v800
    %833 = vst [vmem:[#allocation5 + $0x40] sm:$0xff] %v801
    %834 = vst [vmem:[#allocation5 + $0x48] sm:$0xff] %v802
    %835 = vst [vmem:[#allocation5 + $0x50] sm:$0xff] %v803
    %836 = vst [vmem:[#allocation5 + $0x58] sm:$0xff] %v804
    %837 = vst [vmem:[#allocation5 + $0x60] sm:$0xff] %v805
    %838 = vst [vmem:[#allocation5 + $0x68] sm:$0xff] %v806
    %839 = vst [vmem:[#allocation5 + $0x70] sm:$0xff] %v807
    %840 = vst [vmem:[#allocation5 + $0x78] sm:$0xff] %v808
    %841 = vst [vmem:[#allocation5 + $0x80] sm:$0xff] %v809
    %842 = vst [vmem:[#allocation5 + $0x88] sm:$0xff] %v810
    %843 = vst [vmem:[#allocation5 + $0x90] sm:$0xff] %v811
    %844 = vst [vmem:[#allocation5 + $0x98] sm:$0xff] %v812
    %845 = vst [vmem:[#allocation5 + $0xa0] sm:$0xff] %v813
    %846 = vst [vmem:[#allocation5 + $0xa8] sm:$0xff] %v814
    %847 = vst [vmem:[#allocation5 + $0xb0] sm:$0xff] %v815
    %848 = vst [vmem:[#allocation5 + $0xb8] sm:$0xff] %v816
    %849 = vst [vmem:[#allocation5 + $0xc0] sm:$0xff] %v817
    %850 = vst [vmem:[#allocation5 + $0xc8] sm:$0xff] %v818
    %851 = vst [vmem:[#allocation5 + $0xd0] sm:$0xff] %v819
    %852 = vst [vmem:[#allocation5 + $0xd8] sm:$0xff] %v820
    %853 = vst [vmem:[#allocation5 + $0xe0] sm:$0xff] %v821
    %854 = vst [vmem:[#allocation5 + $0xe8] sm:$0xff] %v822
    %855 = vst [vmem:[#allocation5 + $0xf0] sm:$0xff] %v823
    %856 = vst [vmem:[#allocation5 + $0xf8] sm:$0xff] %v824
    // Predicated region
    $region10: #{tpu_custom_call.1} parent=1 // pred_check
      _
    $region11: #{tpu_custom_call.1} parent=1 // pred_check_branch
      %858 = sbr.rel (0) target = $region13
    $region12: #{tpu_custom_call.1} parent=1 // pred_region
      %860 = vsyncadd [#allocation4], 0
      %s861 = sshll.u32 [#allocation5], 4
      %s862 = int_to_ptr.vmem [resolvable:$true] %s861
      %s863 = sshll.u32 %s1, 4
      %s864 = int_to_ptr.hbm [resolvable:$true] %s863
      %869 = dma.vmem_to_hbm [thread:$0]  %s862, 4096, %s864, [#allocation4], 1024, 1024, 64
    $region13: #{tpu_custom_call.1} parent=1 // pred_fallthru
      _
    // Predicated region
    $region14: #{tpu_custom_call.1} parent=1 // pred_check
      _
    $region15: #{tpu_custom_call.1} parent=1 // pred_check_branch
      %871 = sbr.rel (0) target = $region17
    $region16: #{tpu_custom_call.1} parent=1 // pred_region
      %873 = dma.done [#allocation4], 4096
    $region17: #{tpu_custom_call.1} parent=1 // pred_fallthru
      _
    %874 = vsyncpa [#allocation3], 1
    %875 = vsyncpa [#allocation4], 1

</llo_original>
